<compile_context>
chip_gen: v7x
topology: tpu7x:2x2x1
jax: 0.10.0
libtpu: 0.0.40
codegen_flags: <defaults>
</compile_context>

<pallas_src>
import jax
import jax.numpy as jnp
from jax.experimental import pallas as pl
from jax.experimental.pallas import tpu as pltpu


def _round_up(x, m):
    return (x + m - 1) // m * m


def _attention_kernel(decb_ref, enc_ref, bias_ref, weT_ref, v_ref, out_ref):
    TB, S, D_enc = enc_ref.shape
    D_dec = decb_ref.shape[-1]

    enc = enc_ref[...]                                    # (TB, S, D_enc), src dtype

    # Encoder projection: one batched MXU GEMM per grid step.
    # S % 8 == 0 (padded in the wrapper) -> reshape is a free view.
    proj = jnp.dot(enc.reshape(TB * S, D_enc), weT_ref[...],
                   preferred_element_type=jnp.float32)    # (TB*S, D_dec) f32
    proj = proj.reshape(TB, S, D_dec)

    # Hoisted decoder projection + bias (constant over the sequence axis).
    decb = decb_ref[...][:, None, :]                      # (TB, 1, D_dec) f32
    energy = jnp.tanh(proj + decb)                        # (TB, S, D_dec) EUP tanh

    # v-projection as a VPU multiply + lane reduce -> lane-dense (TB, S) score.
    score = jnp.sum(energy * v_ref[...], axis=-1)         # (TB, S) f32

    # Additive mask bias: 0 for valid positions, -inf for masked / padded ones.
    score = score + bias_ref[...]

    # Softmax over the sequence (lane) axis; normalize after the reduction.
    m = jnp.max(score, axis=-1, keepdims=True)            # (TB, 1)
    e = jnp.exp(score - m)                                # (TB, S)
    denom = jnp.sum(e, axis=-1, keepdims=True)            # (TB, 1)

    # Un-normalized weighted sum of encoder states, then one (TB, D_enc) scale.
    att = jnp.sum(e[:, :, None] * enc.astype(jnp.float32), axis=1)   # (TB, D_enc)
    out_ref[...] = (att / denom).astype(out_ref.dtype)    # dense 2-D store


def _choose_tiling(B, S_pad, D_enc, D_dec, enc_itemsize,
                   footprint_budget=28 << 20):
    """Pick a batch tile TB (multiple of 8) from a full VMEM footprint model."""
    B8 = _round_up(max(B, 1), 8)

    def footprint(tb):
        enc_tile = 2 * tb * S_pad * D_enc * enc_itemsize          # dbl-buffered input
        small_io = 2 * tb * (D_dec + S_pad + D_enc) * 4           # decb / bias / out
        weights = 2 * (D_enc * D_dec * enc_itemsize + D_dec * 4)  # weT / v (dbl-buf)
        inter = tb * S_pad * (2 * D_dec + 2 * D_enc + 8) * 4      # proj/energy/e/...
        return enc_tile + small_io + weights + inter

    if B8 >= 16:
        # Keep >= 2 grid steps so v7x megacore sharding / pipelining have work.
        tb = max(8, (B8 // 2) // 8 * 8)
    else:
        tb = B8
    while tb > 8 and footprint(tb) > footprint_budget:
        tb -= 8

    B_pad = _round_up(B, tb)
    # Scoped VMEM request sized from the model; capped well under v7x's 64 MiB.
    vmem_limit = int(min(48 << 20, max(16 << 20, footprint(tb) + (2 << 20))))
    return tb, B_pad, vmem_limit


def base_attention(dec_state, enc_states, att_mask, w_attn, b_attn, w_v):
    """
    dec_state : (B, 1, D_dec)
    enc_states: (B, S, D_enc)   (kept in its source dtype; bf16 supported)
    att_mask  : (B, S)          (0 == masked)
    w_attn    : (D_dec, D_dec + D_enc)  -- torch Linear weight (out, in)
    b_attn    : (D_dec,)
    w_v       : (1, D_dec)              -- torch Linear weight, no bias
    returns   : (B, 1, D_enc)
    """
    B, S, D_enc = enc_states.shape
    D_dec = dec_state.shape[-1]

    enc_dtype = enc_states.dtype          # no wrapper upcast: DMA source dtype
    out_dtype = enc_dtype

    w_attn = jnp.asarray(w_attn)
    wd = w_attn[:, :D_dec].astype(jnp.float32)                    # (D_dec, D_dec)
    weT = w_attn[:, D_dec:].T.astype(enc_dtype)                   # (D_enc, D_dec)
    v_row = jnp.asarray(w_v).reshape(1, D_dec).astype(jnp.float32)

    # Hoisted decoder projection + bias: one small XLA GEMM -> (B, D_dec) f32.
    dec_bias = (dec_state[:, 0, :].astype(jnp.float32) @ wd.T
                + jnp.asarray(b_attn, jnp.float32))

    # Mask as an additive bias: 0 keeps the score, -inf masks it.
    mask_bias = jnp.where(jnp.asarray(att_mask) == 0,
                          -jnp.inf, 0.0).astype(jnp.float32)      # (B, S)

    # ---- padding for dense, view-friendly tiles -----------------------------
    S_pad = _round_up(S, 8)
    enc_isz = jnp.dtype(enc_dtype).itemsize
    TB, B_pad, vmem_limit = _choose_tiling(B, S_pad, D_enc, D_dec, enc_isz)

    enc_p = jnp.zeros((B_pad, S_pad, D_enc), enc_dtype).at[:B, :S, :].set(enc_states)
    dec_p = jnp.zeros((B_pad, D_dec), jnp.float32).at[:B, :].set(dec_bias)
    # Padded sequence positions get -inf; padded batch rows keep 0 bias (finite
    # softmax over zero scores -> no NaN; those output rows are discarded).
    bias_p = jnp.zeros((B_pad, S_pad), jnp.float32)
    bias_p = bias_p.at[:B, :S].set(mask_bias)
    if S_pad > S:
        bias_p = bias_p.at[:B, S:].set(-jnp.inf)

    grid = (B_pad // TB,)

    out = pl.pallas_call(
        _attention_kernel,
        out_shape=jax.ShapeDtypeStruct((B_pad, D_enc), out_dtype),
        grid_spec=pltpu.PrefetchScalarGridSpec(
            num_scalar_prefetch=0,
            grid=grid,
            in_specs=[
                pl.BlockSpec((TB, D_dec),        lambda b: (b, 0)),      # dec proj+bias
                pl.BlockSpec((TB, S_pad, D_enc), lambda b: (b, 0, 0)),   # enc_states
                pl.BlockSpec((TB, S_pad),        lambda b: (b, 0)),      # mask bias
                pl.BlockSpec((D_enc, D_dec),     lambda b: (0, 0)),      # W_enc^T
                pl.BlockSpec((1, D_dec),         lambda b: (0, 0)),      # v row
            ],
            out_specs=pl.BlockSpec((TB, D_enc), lambda b: (b, 0)),
        ),
        compiler_params=pltpu.CompilerParams(
            dimension_semantics=("parallel",),
            vmem_limit_bytes=vmem_limit),
    )(dec_p, enc_p, bias_p, weT, v_row)

    return out[:B].reshape(B, 1, D_enc)


def _reference(dec_state, enc_states, att_mask, w_attn, b_attn, w_v):
    B, S, D_enc = enc_states.shape
    dec_rep = jnp.broadcast_to(dec_state, (B, S, dec_state.shape[-1]))
    combined = jnp.concatenate([dec_rep, enc_states], axis=2)
    energy = jnp.tanh(combined @ w_attn.T + b_attn)
    attention = (energy @ w_v.T)[..., 0]
    attention = jnp.where(att_mask == 0, -jnp.inf, attention)
    w = jax.nn.softmax(attention, axis=1)
    return jnp.einsum("bs,bsd->bd", w, enc_states)[:, None, :]


if __name__ == "__main__":
    B, S, D_dec, D_enc = 2, 8, 32, 32

    key = jax.random.PRNGKey(0)
    k1, k2, k3, k4, k5 = jax.random.split(key, 5)

    dec_state = jax.random.normal(k1, (B, 1, D_dec), jnp.float32)
    enc_states = jax.random.normal(k2, (B, S, D_enc), jnp.float32)
    # deterministic mask: last 2 positions of batch 1 are padding
    att_mask = jnp.ones((B, S), jnp.float32).at[1, -2:].set(0.0)

    # deterministic parameter init (uniform like torch Linear default scale)
    bound_attn = 1.0 / jnp.sqrt(D_dec + D_enc)
    w_attn = jax.random.uniform(k3, (D_dec, D_dec + D_enc), jnp.float32,
                                -bound_attn, bound_attn)
    b_attn = jax.random.uniform(k4, (D_dec,), jnp.float32, -bound_attn, bound_attn)
    bound_v = 1.0 / jnp.sqrt(D_dec)
    w_v = jax.random.uniform(k5, (1, D_dec), jnp.float32, -bound_v, bound_v)

    out = base_attention(dec_state, enc_states, att_mask, w_attn, b_attn, w_v)
    out = jax.block_until_ready(out)

    ref = _reference(dec_state, enc_states, att_mask, w_attn, b_attn, w_v)
    assert out.shape == (B, 1, D_enc)
    assert jnp.allclose(out, ref, atol=1e-4, rtol=1e-4)

    print("KERNEL_OK")
</pallas_src>

<mosaic_0001>
module attributes {stable_mosaic.version = 11 : i64} {
  func.func @_attention_kernel(%arg0: i32, %arg1: memref<8x32xf32, #tpu.memory_space<vmem>>, %arg2: memref<8x8x32xf32, #tpu.memory_space<vmem>>, %arg3: memref<8x8xf32, #tpu.memory_space<vmem>>, %arg4: memref<32x32xf32, #tpu.memory_space<vmem>>, %arg5: memref<1x32xf32, #tpu.memory_space<vmem>>, %arg6: memref<8x32xf32, #tpu.memory_space<vmem>>) attributes {dimension_semantics = [#tpu.dimension_semantics<parallel>], iteration_bounds = array<i64: 1>, scalar_prefetch = 0 : i64, scratch_operands = 0 : i64, tpu.core_type = #tpu.core_type<tc>, window_params = [{transform_indices = @transform_0, window_bounds = array<i64: 8, 32>}, {transform_indices = @transform_1, window_bounds = array<i64: 8, 8, 32>}, {transform_indices = @transform_2, window_bounds = array<i64: 8, 8>}, {pipeline_mode = #tpu.pipeline_mode<synchronous>, transform_indices = @transform_3, window_bounds = array<i64: 32, 32>}, {pipeline_mode = #tpu.pipeline_mode<synchronous>, transform_indices = @transform_4, window_bounds = array<i64: 1, 32>}, {transform_indices = @transform_5, window_bounds = array<i64: 8, 32>}]} {
    %c0 = arith.constant 0 : index
    %c0_0 = arith.constant 0 : index
    %c0_1 = arith.constant 0 : index
    %0 = vector.load %arg2[%c0, %c0_0, %c0_1] : memref<8x8x32xf32, #tpu.memory_space<vmem>>, vector<8x8x32xf32>
    %1 = vector.shape_cast %0 : vector<8x8x32xf32> to vector<64x32xf32>
    %c0_2 = arith.constant 0 : index
    %c0_3 = arith.constant 0 : index
    %2 = vector.load %arg4[%c0_2, %c0_3] : memref<32x32xf32, #tpu.memory_space<vmem>>, vector<32x32xf32>
    %cst = arith.constant dense<0.000000e+00> : vector<64x32xf32>
    %3 = tpu.matmul %1, %2, %cst {dimension_numbers = #tpu.dot_dimension_numbers<[1], [0], [0], [1], [0, 0, 1, 1], [], []>} : vector<64x32xf32>, vector<32x32xf32>, vector<64x32xf32> -> vector<64x32xf32>
    %4 = vector.shape_cast %3 : vector<64x32xf32> to vector<8x8x32xf32>
    %c0_4 = arith.constant 0 : index
    %c0_5 = arith.constant 0 : index
    %5 = vector.load %arg1[%c0_4, %c0_5] : memref<8x32xf32, #tpu.memory_space<vmem>>, vector<8x32xf32>
    %6 = vector.shape_cast %5 : vector<8x32xf32> to vector<8x1x32xf32>
    %7 = vector.broadcast %6 : vector<8x1x32xf32> to vector<8x8x32xf32>
    %8 = arith.addf %4, %7 : vector<8x8x32xf32>
    %9 = math.tanh %8 : vector<8x8x32xf32>
    %c0_6 = arith.constant 0 : index
    %c0_7 = arith.constant 0 : index
    %10 = vector.load %arg5[%c0_6, %c0_7] : memref<1x32xf32, #tpu.memory_space<vmem>>, vector<1x32xf32>
    %11 = vector.shape_cast %10 : vector<1x32xf32> to vector<1x1x32xf32>
    %12 = vector.broadcast %11 : vector<1x1x32xf32> to vector<8x8x32xf32>
    %13 = arith.mulf %9, %12 : vector<8x8x32xf32>
    %cst_8 = arith.constant dense<0.000000e+00> : vector<8x8xf32>
    %14 = vector.multi_reduction <add>, %13, %cst_8 [2] : vector<8x8x32xf32> to vector<8x8xf32>
    %c0_9 = arith.constant 0 : index
    %c0_10 = arith.constant 0 : index
    %15 = vector.load %arg3[%c0_9, %c0_10] : memref<8x8xf32, #tpu.memory_space<vmem>>, vector<8x8xf32>
    %16 = arith.addf %14, %15 : vector<8x8xf32>
    %cst_11 = arith.constant dense<0xFF800000> : vector<8xf32>
    %17 = vector.multi_reduction <maximumf>, %16, %cst_11 [1] : vector<8x8xf32> to vector<8xf32>
    %18 = vector.shape_cast %17 : vector<8xf32> to vector<8x1xf32>
    %19 = vector.broadcast %18 : vector<8x1xf32> to vector<8x8xf32>
    %20 = arith.subf %16, %19 : vector<8x8xf32>
    %21 = math.exp %20 : vector<8x8xf32>
    %cst_12 = arith.constant dense<0.000000e+00> : vector<8xf32>
    %22 = vector.multi_reduction <add>, %21, %cst_12 [1] : vector<8x8xf32> to vector<8xf32>
    %23 = vector.shape_cast %22 : vector<8xf32> to vector<8x1xf32>
    %24 = vector.shape_cast %21 : vector<8x8xf32> to vector<8x8x1xf32>
    %25 = vector.broadcast %24 : vector<8x8x1xf32> to vector<8x8x32xf32>
    %26 = arith.mulf %25, %0 : vector<8x8x32xf32>
    %cst_13 = arith.constant dense<0.000000e+00> : vector<8x32xf32>
    %27 = vector.multi_reduction <add>, %26, %cst_13 [1] : vector<8x8x32xf32> to vector<8x32xf32>
    %28 = vector.broadcast %23 : vector<8x1xf32> to vector<8x32xf32>
    %29 = arith.divf %27, %28 : vector<8x32xf32>
    %c0_14 = arith.constant 0 : index
    %c0_15 = arith.constant 0 : index
    %30 = vector.load %arg6[%c0_14, %c0_15] : memref<8x32xf32, #tpu.memory_space<vmem>>, vector<8x32xf32>
    tpu.vector_store %arg6[%c0_14, %c0_15], %29 {strides = array<i32>} : memref<8x32xf32, #tpu.memory_space<vmem>>, vector<8x32xf32>,
    return
  }
  func.func @transform_0(%arg0: i32) -> (i32, i32) {
    %c0_i32 = arith.constant 0 : i32
    %c0_i32_0 = arith.constant 0 : i32
    return %arg0, %c0_i32 : i32, i32
  }
  func.func @transform_1(%arg0: i32) -> (i32, i32, i32) {
    %c0_i32 = arith.constant 0 : i32
    %c0_i32_0 = arith.constant 0 : i32
    %c0_i32_1 = arith.constant 0 : i32
    return %arg0, %c0_i32, %c0_i32_0 : i32, i32, i32
  }
  func.func @transform_2(%arg0: i32) -> (i32, i32) {
    %c0_i32 = arith.constant 0 : i32
    %c0_i32_0 = arith.constant 0 : i32
    return %arg0, %c0_i32 : i32, i32
  }
  func.func @transform_3(%arg0: i32) -> (i32, i32) {
    %c0_i32 = arith.constant 0 : i32
    %c0_i32_0 = arith.constant 0 : i32
    %c0_i32_1 = arith.constant 0 : i32
    return %c0_i32, %c0_i32_0 : i32, i32
  }
  func.func @transform_4(%arg0: i32) -> (i32, i32) {
    %c0_i32 = arith.constant 0 : i32
    %c0_i32_0 = arith.constant 0 : i32
    %c0_i32_1 = arith.constant 0 : i32
    return %c0_i32, %c0_i32_0 : i32, i32
  }
  func.func @transform_5(%arg0: i32) -> (i32, i32) {
    %c0_i32 = arith.constant 0 : i32
    %c0_i32_0 = arith.constant 0 : i32
    return %arg0, %c0_i32 : i32, i32
  }
}

</mosaic_0001>

<llo_original>
// kernel: tpu_custom_call.1
$region0: #{tpu_custom_call.1}
  #allocation0 [shape = 'u32[]', space=smem, size = 0x4, offset = 0x4, fixed_abs, tag = 'smem constant byte address 0x4 - core index']
  #allocation1 [shape = 'u32[144,128]{1,0:T(1,128)}', space=vmem, size = 0x12000, scoped, tag = 'internal scratch']
  %s0 = inlined_call_operand.hbm [shape: f32[8,32], index: 0, kind: input, shape index: {}]
  %s1 = inlined_call_operand.hbm [shape: f32[8,8,32], index: 1, kind: input, shape index: {}]
  %s2 = inlined_call_operand.hbm [shape: f32[8,8], index: 2, kind: input, shape index: {}]
  %s3 = inlined_call_operand.hbm [shape: f32[32,32], index: 3, kind: input, shape index: {}]
  %s4 = inlined_call_operand.vmem [shape: f32[1,32], index: 4, kind: input, shape index: {}]
  %s5 = inlined_call_operand.hbm [shape: f32[8,32], index: 5, kind: output, shape index: {}]
  %s6 = sld [smem:[#allocation0]]
  $region46: #{tpu_custom_call.1} parent=0
    _
  %s8 = ssub.s32 1, %s6
  %s9 = scalar_select 0, %s8, %s6
  $region1: #{tpu_custom_call.1} parent=0
    #allocation2 [shape = 'u8[4096]{0}', space=vmem, size = 0x1000, scoped, tag = 'input window, operand 0, single buffered']
    #allocation3 [shape = 's32[1]{0}', space=sflag, size = 0x4, scoped, tag = 'scoped memory for tpu_custom_call.1']
    #allocation4 [shape = 's32[1]{0}', space=sflag, size = 0x4, scoped, tag = 'scoped memory for tpu_custom_call.1']
    #allocation5 [shape = 'u8[32768]{0}', space=vmem, size = 0x8000, scoped, tag = 'input window, operand 1, single buffered']
    #allocation6 [shape = 's32[1]{0}', space=sflag, size = 0x4, scoped, tag = 'scoped memory for tpu_custom_call.1']
    #allocation7 [shape = 'u8[4096]{0}', space=vmem, size = 0x1000, scoped, tag = 'input window, operand 2, single buffered']
    #allocation8 [shape = 'u8[16384]{0}', space=vmem, size = 0x4000, scoped, tag = 'input window, operand 3, single buffered']
    #allocation9 [shape = 's32[1]{0}', space=sflag, size = 0x4, scoped, tag = 'scoped memory for tpu_custom_call.1']
    #allocation10 [shape = 'u8[4096]{0}', space=vmem, size = 0x1000, scoped, tag = 'output window, operand 0, single buffered']
    %10 = vsyncpa [#allocation3], 0
    %11 = vsyncpa [#allocation6], 0
    %12 = vsyncpa [#allocation9], 0
    %13 = vsyncpa [#allocation4], 0
    // Predicated region
    $region2: #{tpu_custom_call.1} parent=1 // pred_check
      _
    $region3: #{tpu_custom_call.1} parent=1 // pred_check_branch
      %15 = sbr.rel (0) target = $region5
    $region4: #{tpu_custom_call.1} parent=1 // pred_region
      %s17 = ssub.s32 128, 128
      %18 = vsyncadd [#allocation3], %s17
      %s20 = sshll.u32 [#allocation2], 4
      %s21 = int_to_ptr.vmem [resolvable:$true] %s20
      %23 = dma.hbm_to_vmem [thread:$0]  %s0, 128, %s21, [#allocation3]
    $region5: #{tpu_custom_call.1} parent=1 // pred_fallthru
      _
    // Predicated region
    $region6: #{tpu_custom_call.1} parent=1 // pred_check
      _
    $region7: #{tpu_custom_call.1} parent=1 // pred_check_branch
      %25 = sbr.rel (0) target = $region9
    $region8: #{tpu_custom_call.1} parent=1 // pred_region
      %s27 = ssub.s32 1024, 1024
      %28 = vsyncadd [#allocation6], %s27
      %s29 = sshll.u32 [#allocation5], 4
      %s30 = int_to_ptr.vmem [resolvable:$true] %s29
      %35 = dma.hbm_to_vmem [thread:$0]  %s1, 1024, %s30, [#allocation6], 128, 128, 8
    $region9: #{tpu_custom_call.1} parent=1 // pred_fallthru
      _
    // Predicated region
    $region10: #{tpu_custom_call.1} parent=1 // pred_check
      _
    $region11: #{tpu_custom_call.1} parent=1 // pred_check_branch
      %37 = sbr.rel (0) target = $region13
    $region12: #{tpu_custom_call.1} parent=1 // pred_region
      %s39 = ssub.s32 128, 128
      %40 = vsyncadd [#allocation6], %s39
      %s42 = sshll.u32 [#allocation7], 4
      %s43 = int_to_ptr.vmem [resolvable:$true] %s42
      %45 = dma.hbm_to_vmem [thread:$0]  %s2, 128, %s43, [#allocation6]
    $region13: #{tpu_custom_call.1} parent=1 // pred_fallthru
      _
    // Predicated region
    $region14: #{tpu_custom_call.1} parent=1 // pred_check
      _
    $region15: #{tpu_custom_call.1} parent=1 // pred_check_branch
      %47 = sbr.rel (0) target = $region17
    $region16: #{tpu_custom_call.1} parent=1 // pred_region
      %s49 = ssub.s32 512, 512
      %50 = vsyncadd [#allocation9], %s49
      %s51 = sshll.u32 [#allocation8], 4
      %s52 = int_to_ptr.vmem [resolvable:$true] %s51
      %57 = dma.hbm_to_vmem [thread:$0]  %s3, 512, %s52, [#allocation9], 128, 128, 8
    $region17: #{tpu_custom_call.1} parent=1 // pred_fallthru
      _
    // Predicated region
    $region18: #{tpu_custom_call.1} parent=1 // pred_check
      _
    $region19: #{tpu_custom_call.1} parent=1 // pred_check_branch
      %59 = sbr.rel (0) target = $region21
    $region20: #{tpu_custom_call.1} parent=1 // pred_region
      _
    $region21: #{tpu_custom_call.1} parent=1 // pred_fallthru
      _
    // Predicated region
    $region22: #{tpu_custom_call.1} parent=1 // pred_check
      _
    $region23: #{tpu_custom_call.1} parent=1 // pred_check_branch
      %61 = sbr.rel (0) target = $region25
    $region24: #{tpu_custom_call.1} parent=1 // pred_region
      %62 = dma.done [#allocation3], 128
    $region25: #{tpu_custom_call.1} parent=1 // pred_fallthru
      _
    // Predicated region
    $region26: #{tpu_custom_call.1} parent=1 // pred_check
      _
    $region27: #{tpu_custom_call.1} parent=1 // pred_check_branch
      %64 = sbr.rel (0) target = $region29
    $region28: #{tpu_custom_call.1} parent=1 // pred_region
      %65 = dma.done [#allocation6], 1024
    $region29: #{tpu_custom_call.1} parent=1 // pred_fallthru
      _
    // Predicated region
    $region30: #{tpu_custom_call.1} parent=1 // pred_check
      _
    $region31: #{tpu_custom_call.1} parent=1 // pred_check_branch
      %67 = sbr.rel (0) target = $region33
    $region32: #{tpu_custom_call.1} parent=1 // pred_region
      %68 = dma.done [#allocation6], 128
    $region33: #{tpu_custom_call.1} parent=1 // pred_fallthru
      _
    // Predicated region
    $region34: #{tpu_custom_call.1} parent=1 // pred_check
      _
    $region35: #{tpu_custom_call.1} parent=1 // pred_check_branch
      %70 = sbr.rel (0) target = $region37
    $region36: #{tpu_custom_call.1} parent=1 // pred_region
      %71 = dma.done [#allocation9], 512
    $region37: #{tpu_custom_call.1} parent=1 // pred_fallthru
      _
    %v72 = vld [vmem:[#allocation5] sm:$0xff]
    %v73 = vld [vmem:[#allocation5 + $0x8] sm:$0xff]
    %v74 = vld [vmem:[#allocation5 + $0x10] sm:$0xff]
    %v75 = vld [vmem:[#allocation5 + $0x18] sm:$0xff]
    %v76 = vld [vmem:[#allocation5 + $0x20] sm:$0xff]
    %v77 = vld [vmem:[#allocation5 + $0x28] sm:$0xff]
    %v78 = vld [vmem:[#allocation5 + $0x30] sm:$0xff]
    %v79 = vld [vmem:[#allocation5 + $0x38] sm:$0xff]
    %v80 = vld [vmem:[#allocation8] sm:$0xff]
    %v81 = vld [vmem:[#allocation8 + $0x8] sm:$0xff]
    %v82 = vld [vmem:[#allocation8 + $0x10] sm:$0xff]
    %v83 = vld [vmem:[#allocation8 + $0x18] sm:$0xff]
    %vm84 = vcmask 261120
    %v86 = vsel %vm84, %v72, 0
    %v89 = vsel %vm84, %v73, 0
    %v92 = vsel %vm84, %v74, 0
    %v95 = vsel %vm84, %v75, 0
    %v98 = vsel %vm84, %v76, 0
    %v101 = vsel %vm84, %v77, 0
    %v104 = vsel %vm84, %v78, 0
    %v107 = vsel %vm84, %v79, 0
    %109 = vmatprep.subr.mxu0 0.0
    %110 = vmatpush1.msra.mxu0 %v80
    %111 = vmatprep.subr.mxu0 0.0
    %112 = vmatpush1.msra.mxu0 %v81
    %113 = vmatprep.subr.mxu0 0.0
    %114 = vmatpush1.msra.mxu0 %v82
    %115 = vmatprep.subr.mxu0 0.0
    %116 = vmatpush1.msra.mxu0 %v83
    %117 = vmatprep.subr.mxu0 0.0
    %118 = vmatpush1.msra.mxu0 0.0
    %119 = vmatprep.subr.mxu0 0.0
    %120 = vmatpush1.msra.mxu0 0.0
    %121 = vmatprep.subr.mxu0 0.0
    %122 = vmatpush1.msra.mxu0 0.0
    %123 = vmatprep.subr.mxu0 0.0
    %124 = vmatpush1.msra.mxu0 0.0
    %125 = vmatprep.subr.mxu0 0.0
    %126 = vmatpush1.msra.mxu0 0.0
    %127 = vmatprep.subr.mxu0 0.0
    %128 = vmatpush1.msra.mxu0 0.0
    %129 = vmatprep.subr.mxu0 0.0
    %130 = vmatpush1.msra.mxu0 0.0
    %131 = vmatprep.subr.mxu0 0.0
    %132 = vmatpush1.msra.mxu0 0.0
    %133 = vmatprep.subr.mxu0 0.0
    %134 = vmatpush1.msra.mxu0 0.0
    %135 = vmatprep.subr.mxu0 0.0
    %136 = vmatpush1.msra.mxu0 0.0
    %137 = vmatprep.subr.mxu0 0.0
    %138 = vmatpush1.msra.mxu0 0.0
    %139 = vmatprep.subr.mxu0 0.0
    %140 = vmatpush1.msra.mxu0 0.0
    %141 = vmatprep.subr.mxu0 0.0
    %142 = vmatpush1.msra.mxu0 0.0
    %143 = vmatprep.subr.mxu0 0.0
    %144 = vmatpush1.msra.mxu0 0.0
    %145 = vmatprep.subr.mxu0 0.0
    %146 = vmatpush1.msra.mxu0 0.0
    %147 = vmatprep.subr.mxu0 0.0
    %148 = vmatpush1.msra.mxu0 0.0
    %149 = vmatprep.subr.mxu0 0.0
    %150 = vmatpush1.msra.mxu0 0.0
    %151 = vmatprep.subr.mxu0 0.0
    %152 = vmatpush1.msra.mxu0 0.0
    %153 = vmatprep.subr.mxu0 0.0
    %154 = vmatpush1.msra.mxu0 0.0
    %155 = vmatprep.subr.mxu0 0.0
    %156 = vmatpush1.msra.mxu0 0.0
    %157 = vmatprep.subr.mxu0 0.0
    %158 = vmatpush1.msra.mxu0 0.0
    %159 = vmatprep.subr.mxu0 0.0
    %160 = vmatpush1.msra.mxu0 0.0
    %161 = vmatprep.subr.mxu0 0.0
    %162 = vmatpush1.msra.mxu0 0.0
    %163 = vmatprep.subr.mxu0 0.0
    %164 = vmatpush1.msra.mxu0 0.0
    %165 = vmatprep.subr.mxu0 0.0
    %166 = vmatpush1.msra.mxu0 0.0
    %167 = vmatprep.subr.mxu0 0.0
    %168 = vmatpush1.msra.mxu0 0.0
    %169 = vmatprep.subr.mxu0 0.0
    %170 = vmatpush1.msra.mxu0 0.0
    %171 = vmatprep.subr.mxu0 0.0
    %172 = vmatpush1.msra.mxu0 0.0
    %173 = vmatprep.mubr.f32.mxu0 0.0
    %174 = vmatmul.mubr.f32.gmra.mrb[0].mxu0 %v86
    %v175 = vpop.f32.mrb[0].mxu0
    %v176 = vadd.f32 0.0, %v175
    %v177 = vpop.f32.mrb[0].mxu0
    %178 = vmatprep.mubr.f32.mxu0 0.0
    %179 = vmatmul.mubr.f32.gmra.mrb[0].mxu0 %v89
    %v180 = vpop.f32.mrb[0].mxu0
    %v181 = vadd.f32 0.0, %v180
    %v182 = vpop.f32.mrb[0].mxu0
    %183 = vmatprep.mubr.f32.mxu0 0.0
    %184 = vmatmul.mubr.f32.gmra.mrb[0].mxu0 %v92
    %v185 = vpop.f32.mrb[0].mxu0
    %v186 = vadd.f32 0.0, %v185
    %v187 = vpop.f32.mrb[0].mxu0
    %188 = vmatprep.mubr.f32.mxu0 0.0
    %189 = vmatmul.mubr.f32.gmra.mrb[0].mxu0 %v95
    %v190 = vpop.f32.mrb[0].mxu0
    %v191 = vadd.f32 0.0, %v190
    %v192 = vpop.f32.mrb[0].mxu0
    %193 = vmatprep.mubr.f32.mxu0 0.0
    %194 = vmatmul.mubr.f32.gmra.mrb[0].mxu0 %v98
    %v195 = vpop.f32.mrb[0].mxu0
    %v196 = vadd.f32 0.0, %v195
    %v197 = vpop.f32.mrb[0].mxu0
    %198 = vmatprep.mubr.f32.mxu0 0.0
    %199 = vmatmul.mubr.f32.gmra.mrb[0].mxu0 %v101
    %v200 = vpop.f32.mrb[0].mxu0
    %v201 = vadd.f32 0.0, %v200
    %v202 = vpop.f32.mrb[0].mxu0
    %203 = vmatprep.mubr.f32.mxu0 0.0
    %204 = vmatmul.mubr.f32.gmra.mrb[0].mxu0 %v104
    %v205 = vpop.f32.mrb[0].mxu0
    %v206 = vadd.f32 0.0, %v205
    %v207 = vpop.f32.mrb[0].mxu0
    %208 = vmatprep.mubr.f32.mxu0 0.0
    %209 = vmatmul.mubr.f32.gmra.mrb[0].mxu0 %v107
    %v210 = vpop.f32.mrb[0].mxu0
    %v211 = vadd.f32 0.0, %v210
    %v212 = vpop.f32.mrb[0].mxu0
    %213 = vdwg.mxu0
    %v214 = vld [vmem:[#allocation2] sm:$0xff]
    %v216 = vcombine.high %v214, %v214
    %v218 = vunpack.c.l.s4 1966171168
    %v219 = vunpack.c.0.s8 %v218
    %v220 = vlaneseq
    %v221 = vshrl.u32 %v220, 7
    %v222 = vsub.s32 %v219, %v221
    %v223 = vrot.slane %v214, %v222
    %v225 = vunpack.c.l.s4 1966171168
    %v226 = vunpack.c.0.s8 %v225
    %v227 = vlaneseq
    %v228 = vshrl.u32 %v227, 7
    %v229 = vsub.s32 %v226, %v228
    %v230 = vrot.slane %v216, %v229
    %v231 = vcombine.high %v223, %v223
    %v232 = vcombine.high %v230, %v230
    %v234 = vunpack.c.l.s4 1966171168
    %v235 = vunpack.c.0.s8 %v234
    %v236 = vlaneseq
    %v237 = vshrl.u32 %v236, 7
    %v238 = vsub.s32 %v235, %v237
    %v239 = vrot.slane %v223, %v238
    %v241 = vunpack.c.l.s4 1966171168
    %v242 = vunpack.c.0.s8 %v241
    %v243 = vlaneseq
    %v244 = vshrl.u32 %v243, 7
    %v245 = vsub.s32 %v242, %v244
    %v246 = vrot.slane %v230, %v245
    %v248 = vunpack.c.l.s4 1966171168
    %v249 = vunpack.c.0.s8 %v248
    %v250 = vlaneseq
    %v251 = vshrl.u32 %v250, 7
    %v252 = vsub.s32 %v249, %v251
    %v253 = vrot.slane %v231, %v252
    %v255 = vunpack.c.l.s4 1966171168
    %v256 = vunpack.c.0.s8 %v255
    %v257 = vlaneseq
    %v258 = vshrl.u32 %v257, 7
    %v259 = vsub.s32 %v256, %v258
    %v260 = vrot.slane %v232, %v259
    %v261 = vcombine.high %v239, %v239
    %v262 = vcombine.high %v246, %v246
    %v263 = vcombine.high %v253, %v253
    %v264 = vcombine.high %v260, %v260
    %v265 = vlaneseq
    %v266 = vshrl.u32 %v265, 7
    %v267 = vsub.s32 0, %v266
    %v268 = vrot.slane %v239, %v267
    %v269 = vlaneseq
    %v270 = vshrl.u32 %v269, 7
    %v271 = vsub.s32 0, %v270
    %v272 = vrot.slane %v253, %v271
    %v273 = vlaneseq
    %v274 = vshrl.u32 %v273, 7
    %v275 = vsub.s32 0, %v274
    %v276 = vrot.slane %v261, %v275
    %v277 = vlaneseq
    %v278 = vshrl.u32 %v277, 7
    %v279 = vsub.s32 0, %v278
    %v280 = vrot.slane %v263, %v279
    %v281 = vlaneseq
    %v282 = vshrl.u32 %v281, 7
    %v283 = vsub.s32 0, %v282
    %v284 = vrot.slane %v246, %v283
    %v285 = vlaneseq
    %v286 = vshrl.u32 %v285, 7
    %v287 = vsub.s32 0, %v286
    %v288 = vrot.slane %v260, %v287
    %v289 = vlaneseq
    %v290 = vshrl.u32 %v289, 7
    %v291 = vsub.s32 0, %v290
    %v292 = vrot.slane %v262, %v291
    %v293 = vlaneseq
    %v294 = vshrl.u32 %v293, 7
    %v295 = vsub.s32 0, %v294
    %v296 = vrot.slane %v264, %v295
    %v305 = vadd.f32 %v176, %v268
    %v306 = vadd.f32 %v181, %v272
    %v307 = vadd.f32 %v186, %v276
    %v308 = vadd.f32 %v191, %v280
    %v309 = vadd.f32 %v196, %v284
    %v310 = vadd.f32 %v201, %v288
    %v311 = vadd.f32 %v206, %v292
    %v312 = vadd.f32 %v211, %v296
    %v313 = vtanh.pop %v305
    %v314 = vtanh.pop %v306
    %v315 = vtanh.pop %v307
    %v316 = vtanh.pop %v308
    %v317 = vtanh.pop %v309
    %v318 = vtanh.pop %v310
    %v319 = vtanh.pop %v311
    %v320 = vtanh.pop %v312
    %v321 = vld [vmem:[%s4] sm:$0x1]
    %v323 = vlaneseq
    %v324 = vshrl.u32 %v323, 7
    %v325 = vsub.s32 0, %v324
    %v326 = vrot.slane %v321, %v325
    %v328 = vmul.f32 %v313, %v326
    %v329 = vmul.f32 %v314, %v326
    %v330 = vmul.f32 %v315, %v326
    %v331 = vmul.f32 %v316, %v326
    %v332 = vmul.f32 %v317, %v326
    %v333 = vmul.f32 %v318, %v326
    %v334 = vmul.f32 %v319, %v326
    %v335 = vmul.f32 %v320, %v326
    %v336 = vsel %vm84, %v328, 0.0
    %337 = vadd.xlane.f32.xlu0 %v336
    %v338 = vpop.xlane.xlu0 %337
    %v339 = vsel %vm84, %v329, 0.0
    %340 = vadd.xlane.f32.xlu0 %v339
    %v341 = vpop.xlane.xlu0 %340
    %v342 = vsel %vm84, %v330, 0.0
    %343 = vadd.xlane.f32.xlu0 %v342
    %v344 = vpop.xlane.xlu0 %343
    %v345 = vsel %vm84, %v331, 0.0
    %346 = vadd.xlane.f32.xlu0 %v345
    %v347 = vpop.xlane.xlu0 %346
    %v348 = vsel %vm84, %v332, 0.0
    %349 = vadd.xlane.f32.xlu0 %v348
    %v350 = vpop.xlane.xlu0 %349
    %v351 = vsel %vm84, %v333, 0.0
    %352 = vadd.xlane.f32.xlu0 %v351
    %v353 = vpop.xlane.xlu0 %352
    %v354 = vsel %vm84, %v334, 0.0
    %355 = vadd.xlane.f32.xlu0 %v354
    %v356 = vpop.xlane.xlu0 %355
    %v357 = vsel %vm84, %v335, 0.0
    %358 = vadd.xlane.f32.xlu0 %v357
    %v359 = vpop.xlane.xlu0 %358
    %v360 = vld [vmem:[#allocation7] sm:$0xff]
    %v362 = vlaneseq
    %v363 = vshrl.u32 %v362, 7
    %v364 = vsub.s32 0, %v363
    %v365 = vrot.slane %v360, %v364
    %367 = vbcast.lane.b32.xlu0 %v365, 256
    %v368 = vpop.permute.xlu0 %367
    %v369 = vlaneseq
    %v370 = vshrl.u32 %v369, 7
    %v371 = vsub.s32 1, %v370
    %v372 = vrot.slane %v360, %v371
    %374 = vbcast.lane.b32.xlu0 %v372, 256
    %v375 = vpop.permute.xlu0 %374
    %v376 = vlaneseq
    %v377 = vshrl.u32 %v376, 7
    %v378 = vsub.s32 2, %v377
    %v379 = vrot.slane %v360, %v378
    %381 = vbcast.lane.b32.xlu0 %v379, 256
    %v382 = vpop.permute.xlu0 %381
    %v383 = vlaneseq
    %v384 = vshrl.u32 %v383, 7
    %v385 = vsub.s32 3, %v384
    %v386 = vrot.slane %v360, %v385
    %388 = vbcast.lane.b32.xlu0 %v386, 256
    %v389 = vpop.permute.xlu0 %388
    %v390 = vlaneseq
    %v391 = vshrl.u32 %v390, 7
    %v392 = vsub.s32 4, %v391
    %v393 = vrot.slane %v360, %v392
    %395 = vbcast.lane.b32.xlu0 %v393, 256
    %v396 = vpop.permute.xlu0 %395
    %v397 = vlaneseq
    %v398 = vshrl.u32 %v397, 7
    %v399 = vsub.s32 5, %v398
    %v400 = vrot.slane %v360, %v399
    %402 = vbcast.lane.b32.xlu0 %v400, 256
    %v403 = vpop.permute.xlu0 %402
    %v404 = vlaneseq
    %v405 = vshrl.u32 %v404, 7
    %v406 = vsub.s32 6, %v405
    %v407 = vrot.slane %v360, %v406
    %409 = vbcast.lane.b32.xlu0 %v407, 256
    %v410 = vpop.permute.xlu0 %409
    %v411 = vlaneseq
    %v412 = vshrl.u32 %v411, 7
    %v413 = vsub.s32 7, %v412
    %v414 = vrot.slane %v360, %v413
    %416 = vbcast.lane.b32.xlu0 %v414, 256
    %v417 = vpop.permute.xlu0 %416
    %v426 = vadd.f32 %v338, %v368
    %v427 = vadd.f32 %v341, %v375
    %v428 = vadd.f32 %v344, %v382
    %v429 = vadd.f32 %v347, %v389
    %v430 = vadd.f32 %v350, %v396
    %v431 = vadd.f32 %v353, %v403
    %v432 = vadd.f32 %v356, %v410
    %v433 = vadd.f32 %v359, %v417
    %442 = vset.pattern.permute.xlu0 0
    %443 = vperm.xlu0 %442, %v426
    %v444 = vpop.permute.xlu0 %443
    %445 = vset.pattern.permute.xlu0 0
    %446 = vperm.xlu0 %445, %v427
    %v447 = vpop.permute.xlu0 %446
    %448 = vset.pattern.permute.xlu0 0
    %449 = vperm.xlu0 %448, %v428
    %v450 = vpop.permute.xlu0 %449
    %451 = vset.pattern.permute.xlu0 0
    %452 = vperm.xlu0 %451, %v429
    %v453 = vpop.permute.xlu0 %452
    %454 = vset.pattern.permute.xlu0 0
    %455 = vperm.xlu0 %454, %v430
    %v456 = vpop.permute.xlu0 %455
    %457 = vset.pattern.permute.xlu0 0
    %458 = vperm.xlu0 %457, %v431
    %v459 = vpop.permute.xlu0 %458
    %460 = vset.pattern.permute.xlu0 0
    %461 = vperm.xlu0 %460, %v432
    %v462 = vpop.permute.xlu0 %461
    %463 = vset.pattern.permute.xlu0 0
    %464 = vperm.xlu0 %463, %v433
    %v465 = vpop.permute.xlu0 %464
    %v466 = vlaneseq
    %v467 = vand.u32 %v466, 127
    %v468 = vlaneseq
    %v469 = vshrl.u32 %v468, 7
    %v470 = vsub.s32 %v467, %v469
    %v471 = vrot.slane %v444, %v470
    %v472 = vlaneseq
    %v473 = vshrl.u32 %v472, 7
    %v474 = vsub.s32 %v467, %v473
    %v475 = vrot.slane %v447, %v474
    %v476 = vlaneseq
    %v477 = vshrl.u32 %v476, 7
    %v478 = vsub.s32 %v467, %v477
    %v479 = vrot.slane %v450, %v478
    %v480 = vlaneseq
    %v481 = vshrl.u32 %v480, 7
    %v482 = vsub.s32 %v467, %v481
    %v483 = vrot.slane %v453, %v482
    %v484 = vlaneseq
    %v485 = vshrl.u32 %v484, 7
    %v486 = vsub.s32 %v467, %v485
    %v487 = vrot.slane %v456, %v486
    %v488 = vlaneseq
    %v489 = vshrl.u32 %v488, 7
    %v490 = vsub.s32 %v467, %v489
    %v491 = vrot.slane %v459, %v490
    %v492 = vlaneseq
    %v493 = vshrl.u32 %v492, 7
    %v494 = vsub.s32 %v467, %v493
    %v495 = vrot.slane %v462, %v494
    %v496 = vlaneseq
    %v497 = vshrl.u32 %v496, 7
    %v498 = vsub.s32 %v467, %v497
    %v499 = vrot.slane %v465, %v498
    %vm500 = vcmask 1041409
    %v501 = vsel %vm500, %v475, %v471
    %vm502 = vcmask 1042434
    %v503 = vsel %vm502, %v479, %v501
    %vm504 = vcmask 1043459
    %v505 = vsel %vm504, %v483, %v503
    %vm506 = vcmask 1044484
    %v507 = vsel %vm506, %v487, %v505
    %vm508 = vcmask 1045509
    %v509 = vsel %vm508, %v491, %v507
    %vm510 = vcmask 1046534
    %v511 = vsel %vm510, %v495, %v509
    %vm512 = vcmask 1047559
    %v513 = vsel %vm512, %v499, %v511
    %vm515 = vcmask 64512
    %v516 = vsel %vm515, %v513, -inf
    %517 = vmax.xlane.f32.xlu0 %v516
    %v518 = vpop.xlane.xlu0 %517
    %v520 = vlaneseq
    %v521 = vshrl.u32 %v520, 7
    %v522 = vsub.s32 0, %v521
    %v523 = vrot.slane %v518, %v522
    %v524 = vlaneseq
    %v525 = vshrl.u32 %v524, 7
    %v526 = vsub.s32 1, %v525
    %v527 = vrot.slane %v518, %v526
    %v528 = vlaneseq
    %v529 = vshrl.u32 %v528, 7
    %v530 = vsub.s32 2, %v529
    %v531 = vrot.slane %v518, %v530
    %v532 = vlaneseq
    %v533 = vshrl.u32 %v532, 7
    %v534 = vsub.s32 3, %v533
    %v535 = vrot.slane %v518, %v534
    %v536 = vlaneseq
    %v537 = vshrl.u32 %v536, 7
    %v538 = vsub.s32 4, %v537
    %v539 = vrot.slane %v518, %v538
    %v540 = vlaneseq
    %v541 = vshrl.u32 %v540, 7
    %v542 = vsub.s32 5, %v541
    %v543 = vrot.slane %v518, %v542
    %v544 = vlaneseq
    %v545 = vshrl.u32 %v544, 7
    %v546 = vsub.s32 6, %v545
    %v547 = vrot.slane %v518, %v546
    %v548 = vlaneseq
    %v549 = vshrl.u32 %v548, 7
    %v550 = vsub.s32 7, %v549
    %v551 = vrot.slane %v518, %v550
    %v560 = vsub.f32 %v426, %v523
    %v561 = vsub.f32 %v427, %v527
    %v562 = vsub.f32 %v428, %v531
    %v563 = vsub.f32 %v429, %v535
    %v564 = vsub.f32 %v430, %v539
    %v565 = vsub.f32 %v431, %v543
    %v566 = vsub.f32 %v432, %v547
    %v567 = vsub.f32 %v433, %v551
    %v568 = vmul.f32 %v560, 1.442695
    %v569 = vpow.pop %v568
    %v570 = vmul.f32 %v561, 1.442695
    %v571 = vpow.pop %v570
    %v572 = vmul.f32 %v562, 1.442695
    %v573 = vpow.pop %v572
    %v574 = vmul.f32 %v563, 1.442695
    %v575 = vpow.pop %v574
    %v576 = vmul.f32 %v564, 1.442695
    %v577 = vpow.pop %v576
    %v578 = vmul.f32 %v565, 1.442695
    %v579 = vpow.pop %v578
    %v580 = vmul.f32 %v566, 1.442695
    %v581 = vpow.pop %v580
    %v582 = vmul.f32 %v567, 1.442695
    %v583 = vpow.pop %v582
    %592 = vset.pattern.permute.xlu0 0
    %593 = vperm.xlu0 %592, %v569
    %v594 = vpop.permute.xlu0 %593
    %595 = vset.pattern.permute.xlu0 0
    %596 = vperm.xlu0 %595, %v571
    %v597 = vpop.permute.xlu0 %596
    %598 = vset.pattern.permute.xlu0 0
    %599 = vperm.xlu0 %598, %v573
    %v600 = vpop.permute.xlu0 %599
    %601 = vset.pattern.permute.xlu0 0
    %602 = vperm.xlu0 %601, %v575
    %v603 = vpop.permute.xlu0 %602
    %604 = vset.pattern.permute.xlu0 0
    %605 = vperm.xlu0 %604, %v577
    %v606 = vpop.permute.xlu0 %605
    %607 = vset.pattern.permute.xlu0 0
    %608 = vperm.xlu0 %607, %v579
    %v609 = vpop.permute.xlu0 %608
    %610 = vset.pattern.permute.xlu0 0
    %611 = vperm.xlu0 %610, %v581
    %v612 = vpop.permute.xlu0 %611
    %613 = vset.pattern.permute.xlu0 0
    %614 = vperm.xlu0 %613, %v583
    %v615 = vpop.permute.xlu0 %614
    %v616 = vlaneseq
    %v617 = vshrl.u32 %v616, 7
    %v618 = vsub.s32 %v467, %v617
    %v619 = vrot.slane %v594, %v618
    %v620 = vlaneseq
    %v621 = vshrl.u32 %v620, 7
    %v622 = vsub.s32 %v467, %v621
    %v623 = vrot.slane %v597, %v622
    %v624 = vlaneseq
    %v625 = vshrl.u32 %v624, 7
    %v626 = vsub.s32 %v467, %v625
    %v627 = vrot.slane %v600, %v626
    %v628 = vlaneseq
    %v629 = vshrl.u32 %v628, 7
    %v630 = vsub.s32 %v467, %v629
    %v631 = vrot.slane %v603, %v630
    %v632 = vlaneseq
    %v633 = vshrl.u32 %v632, 7
    %v634 = vsub.s32 %v467, %v633
    %v635 = vrot.slane %v606, %v634
    %v636 = vlaneseq
    %v637 = vshrl.u32 %v636, 7
    %v638 = vsub.s32 %v467, %v637
    %v639 = vrot.slane %v609, %v638
    %v640 = vlaneseq
    %v641 = vshrl.u32 %v640, 7
    %v642 = vsub.s32 %v467, %v641
    %v643 = vrot.slane %v612, %v642
    %v644 = vlaneseq
    %v645 = vshrl.u32 %v644, 7
    %v646 = vsub.s32 %v467, %v645
    %v647 = vrot.slane %v615, %v646
    %v648 = vsel %vm500, %v623, %v619
    %v649 = vsel %vm502, %v627, %v648
    %v650 = vsel %vm504, %v631, %v649
    %v651 = vsel %vm506, %v635, %v650
    %v652 = vsel %vm508, %v639, %v651
    %v653 = vsel %vm510, %v643, %v652
    %v654 = vsel %vm512, %v647, %v653
    %v656 = vsel %vm515, %v654, 0.0
    %657 = vadd.xlane.f32.xlu0 %v656
    %v658 = vpop.xlane.xlu0 %657
    %v667 = vmul.f32 %v594, %v72
    %v668 = vmul.f32 %v597, %v73
    %v669 = vmul.f32 %v600, %v74
    %v670 = vmul.f32 %v603, %v75
    %v671 = vmul.f32 %v606, %v76
    %v672 = vmul.f32 %v609, %v77
    %v673 = vmul.f32 %v612, %v78
    %v674 = vmul.f32 %v615, %v79
    %v675 = vsel %vm84, %v667, 0.0
    %v676 = vrot.slane %v675, 4
    %v677 = vadd.f32 %v675, %v676
    %v678 = vrot.slane %v677, 2
    %v679 = vadd.f32 %v677, %v678
    %v680 = vrot.slane %v679, 1
    %v681 = vadd.f32 %v679, %v680
    %v682 = vsel %vm84, %v668, 0.0
    %v683 = vrot.slane %v682, 4
    %v684 = vadd.f32 %v682, %v683
    %v685 = vrot.slane %v684, 2
    %v686 = vadd.f32 %v684, %v685
    %v687 = vrot.slane %v686, 1
    %v688 = vadd.f32 %v686, %v687
    %v689 = vsel %vm84, %v669, 0.0
    %v690 = vrot.slane %v689, 4
    %v691 = vadd.f32 %v689, %v690
    %v692 = vrot.slane %v691, 2
    %v693 = vadd.f32 %v691, %v692
    %v694 = vrot.slane %v693, 1
    %v695 = vadd.f32 %v693, %v694
    %v696 = vsel %vm84, %v670, 0.0
    %v697 = vrot.slane %v696, 4
    %v698 = vadd.f32 %v696, %v697
    %v699 = vrot.slane %v698, 2
    %v700 = vadd.f32 %v698, %v699
    %v701 = vrot.slane %v700, 1
    %v702 = vadd.f32 %v700, %v701
    %v703 = vsel %vm84, %v671, 0.0
    %v704 = vrot.slane %v703, 4
    %v705 = vadd.f32 %v703, %v704
    %v706 = vrot.slane %v705, 2
    %v707 = vadd.f32 %v705, %v706
    %v708 = vrot.slane %v707, 1
    %v709 = vadd.f32 %v707, %v708
    %v710 = vsel %vm84, %v672, 0.0
    %v711 = vrot.slane %v710, 4
    %v712 = vadd.f32 %v710, %v711
    %v713 = vrot.slane %v712, 2
    %v714 = vadd.f32 %v712, %v713
    %v715 = vrot.slane %v714, 1
    %v716 = vadd.f32 %v714, %v715
    %v717 = vsel %vm84, %v673, 0.0
    %v718 = vrot.slane %v717, 4
    %v719 = vadd.f32 %v717, %v718
    %v720 = vrot.slane %v719, 2
    %v721 = vadd.f32 %v719, %v720
    %v722 = vrot.slane %v721, 1
    %v723 = vadd.f32 %v721, %v722
    %v724 = vsel %vm84, %v674, 0.0
    %v725 = vrot.slane %v724, 4
    %v726 = vadd.f32 %v724, %v725
    %v727 = vrot.slane %v726, 2
    %v728 = vadd.f32 %v726, %v727
    %v729 = vrot.slane %v728, 1
    %v730 = vadd.f32 %v728, %v729
    %v732 = vrot.slane %v658, 1
    %v733 = vrot.slane %v658, 2
    %v734 = vrot.slane %v658, 3
    %v735 = vrot.slane %v658, 4
    %v736 = vrot.slane %v658, 5
    %v737 = vrot.slane %v658, 6
    %v738 = vrot.slane %v658, 7
    %v747 = vrcp.pop %v658
    %v748 = vmul.f32 %v681, %v747
    %v749 = vrcp.pop %v732
    %v750 = vmul.f32 %v688, %v749
    %v751 = vrcp.pop %v733
    %v752 = vmul.f32 %v695, %v751
    %v753 = vrcp.pop %v734
    %v754 = vmul.f32 %v702, %v753
    %v755 = vrcp.pop %v735
    %v756 = vmul.f32 %v709, %v755
    %v757 = vrcp.pop %v736
    %v758 = vmul.f32 %v716, %v757
    %v759 = vrcp.pop %v737
    %v760 = vmul.f32 %v723, %v759
    %v761 = vrcp.pop %v738
    %v762 = vmul.f32 %v730, %v761
    %v771 = vrot.slane %v750, 7
    %v772 = vsel %vm500, %v771, %v748
    %v773 = vrot.slane %v752, 6
    %v774 = vsel %vm502, %v773, %v772
    %v775 = vrot.slane %v754, 5
    %v776 = vsel %vm504, %v775, %v774
    %v777 = vrot.slane %v756, 4
    %v778 = vsel %vm506, %v777, %v776
    %v779 = vrot.slane %v758, 3
    %v780 = vsel %vm508, %v779, %v778
    %v781 = vrot.slane %v760, 2
    %v782 = vsel %vm510, %v781, %v780
    %v783 = vrot.slane %v762, 1
    %v784 = vsel %vm512, %v783, %v782
    %786 = vst.msk [vmem:[#allocation10] sm:$0xff] %vm84, %v784
    // Predicated region
    $region38: #{tpu_custom_call.1} parent=1 // pred_check
      _
    $region39: #{tpu_custom_call.1} parent=1 // pred_check_branch
      %788 = sbr.rel (0) target = $region41
    $region40: #{tpu_custom_call.1} parent=1 // pred_region
      %s790 = ssub.s32 128, 128
      %791 = vsyncadd [#allocation4], %s790
      %s793 = sshll.u32 [#allocation10], 4
      %s794 = int_to_ptr.vmem [resolvable:$true] %s793
      %796 = dma.vmem_to_hbm [thread:$0]  %s794, 128, %s5, [#allocation4]
    $region41: #{tpu_custom_call.1} parent=1 // pred_fallthru
      _
    // Predicated region
    $region42: #{tpu_custom_call.1} parent=1 // pred_check
      _
    $region43: #{tpu_custom_call.1} parent=1 // pred_check_branch
      %798 = sbr.rel (0) target = $region45
    $region44: #{tpu_custom_call.1} parent=1 // pred_region
      %799 = dma.done [#allocation4], 128
    $region45: #{tpu_custom_call.1} parent=1 // pred_fallthru
      _
    %800 = vsyncpa [#allocation3], 1
    %801 = vsyncpa [#allocation6], 1
    %802 = vsyncpa [#allocation9], 1
    %803 = vsyncpa [#allocation4], 1

</llo_original>
